<compile_context>
chip_gen: v7x
topology: tpu7x:2x2x1
jax: 0.10.0
libtpu: 0.0.40
codegen_flags: <defaults>
</compile_context>

<pallas_src>
import functools

import jax
import jax.numpy as jnp
from jax import lax
from jax.experimental import pallas as pl
from jax.experimental.pallas import tpu as pltpu


def _mha_kernel(x_ref, wqkv_ref, wo_ref, o_ref, ho_ref, *, num_heads, head_dim):
    # x_ref   : (1, N, C)        activations for this batch element (compute dtype)
    # wqkv_ref: (C, 3*hidden)    fused QKV projection (scale folded into the Q part)
    # wo_ref  : (hidden, C)      output projection
    # o_ref   : (1, N, C)        output block
    # ho_ref  : (N, hidden)      VMEM scratch holding the concatenated head outputs
    hidden = num_heads * head_dim
    x = x_ref[0]                                   # (N, C)
    cdt = x.dtype                                  # MXU input dtype (bf16 by default)

    # 1) Single full-width QKV projection on the MXU, f32 accumulation.
    qkv = jnp.dot(x, wqkv_ref[...], preferred_element_type=jnp.float32)   # (N, 3*hidden)
    qkv_c = qkv.astype(cdt)

    # 2) Per-head attention.  num_heads is static and small -> fully unrolled,
    #    all slices static (no lane-dynamic indexing).
    for h in range(num_heads):
        lo = h * head_dim
        hi = lo + head_dim
        q = qkv_c[:, lo:hi]                                    # (N, Dh)
        k = qkv_c[:, hidden + lo:hidden + hi]                  # (N, Dh)
        v = qkv_c[:, 2 * hidden + lo:2 * hidden + hi]          # (N, Dh)

        # q @ k.T via contracting dims ((1,),(1,)) -- MXU consumes k transposed,
        # no explicit XLU transpose / extra VMEM round trip.
        s = lax.dot_general(q, k, dimension_numbers=(((1,), (1,)), ((), ())),
                            preferred_element_type=jnp.float32)            # (N, N)

        # Numerically stable softmax in f32 (scale already folded into Wq).
        s = s - jnp.max(s, axis=-1, keepdims=True)
        p = jnp.exp(s)
        p = p * pl.reciprocal(jnp.sum(p, axis=-1, keepdims=True), approx=True)

        head_out = jnp.dot(p.astype(cdt), v, preferred_element_type=jnp.float32)  # (N, Dh)
        ho_ref[:, lo:hi] = head_out.astype(cdt)

    # 3) Single full-width output projection over the concatenated heads.
    o_ref[0] = jnp.dot(ho_ref[...], wo_ref[...],
                       preferred_element_type=jnp.float32).astype(o_ref.dtype)


def prepare_mha_weights(w_qkv, w_proj, *, num_heads, head_dim,
                        compute_dtype=jnp.bfloat16):
    """One-time weight prep (hoisted out of the per-call path).

    w_qkv : (3*hidden, C)  nn.Linear(dim, 3*hidden, bias=False) weight
    w_proj: (C, hidden)    nn.Linear(hidden, dim, bias=False) weight
    Returns (w_qkv_t (C, 3*hidden), w_proj_t (hidden, C)) in compute_dtype,
    with the 1/sqrt(head_dim) softmax scale folded into the Q columns.
    """
    hidden = num_heads * head_dim
    scale = head_dim ** (-0.5)
    w_qkv = w_qkv.astype(jnp.float32)
    w_qkv = w_qkv.at[:hidden].multiply(scale)                  # fold scale into Wq
    w_qkv_t = jnp.transpose(w_qkv).astype(compute_dtype)       # (C, 3*hidden)
    w_proj_t = jnp.transpose(w_proj.astype(jnp.float32)).astype(compute_dtype)  # (hidden, C)
    return w_qkv_t, w_proj_t


@functools.partial(jax.jit, static_argnames=("num_heads", "head_dim"))
def multi_head_attention(x, w_qkv_t, w_proj_t, *, num_heads: int, head_dim: int):
    """x: (B, N, C).  w_qkv_t/w_proj_t: outputs of prepare_mha_weights()."""
    B, N, C = x.shape
    hidden = num_heads * head_dim
    compute_dtype = w_qkv_t.dtype
    cbytes = jnp.dtype(compute_dtype).itemsize
    obytes = jnp.dtype(x.dtype).itemsize
    xc = x.astype(compute_dtype)

    # Rough per-grid-step VMEM need: double-buffered x and out, resident weights,
    # f32 qkv + (N,N) f32 score/prob temporaries, the (N,hidden) scratch.
    est = (2 * N * C * cbytes * 2
           + 2 * N * C * obytes
           + (3 * C * hidden + hidden * C) * cbytes
           + N * 3 * hidden * 4
           + 3 * N * N * 4
           + N * hidden * cbytes)
    # Raise above the small default scoped limits (16 MiB v5e / 32 MiB v6e,v7x)
    # when needed; cap at 64 MiB so it also fits v7x's physical VMEM.
    vmem_limit = int(min(max(2 * est, 32 * 1024 * 1024), 64 * 1024 * 1024))

    kernel = functools.partial(_mha_kernel, num_heads=num_heads, head_dim=head_dim)

    return pl.pallas_call(
        kernel,
        out_shape=jax.ShapeDtypeStruct((B, N, C), x.dtype),
        grid_spec=pltpu.PrefetchScalarGridSpec(
            num_scalar_prefetch=0,
            grid=(B,),
            in_specs=[
                pl.BlockSpec((1, N, C), lambda b: (b, 0, 0)),
                # Grid-invariant weights: DMA'd once, stay VMEM-resident.
                pl.BlockSpec((C, 3 * hidden), lambda b: (0, 0)),
                pl.BlockSpec((hidden, C), lambda b: (0, 0)),
            ],
            out_specs=pl.BlockSpec((1, N, C), lambda b: (b, 0, 0)),
            scratch_shapes=[pltpu.VMEM((N, hidden), compute_dtype)],
        ),
        compiler_params=pltpu.CompilerParams(
            dimension_semantics=("parallel",),
            vmem_limit_bytes=vmem_limit,
        ),
    )(xc, w_qkv_t, w_proj_t)


def multi_head_attention_ref(x, w_qkv, w_proj, *, num_heads: int, head_dim: int):
    """Pure-JAX f32 reference mirroring the PyTorch forward exactly."""
    B, N, C = x.shape
    scale = head_dim ** (-0.5)
    qkv = x @ w_qkv.T                                   # (B, N, 3*hidden)
    qkv = qkv.reshape(B, N, 3, num_heads, head_dim).transpose(2, 0, 3, 1, 4)
    q, k, v = qkv[0], qkv[1], qkv[2]                    # (B, H, N, Dh)
    attn = jnp.einsum("bhnd,bhmd->bhnm", q, k) * scale
    attn = jax.nn.softmax(attn, axis=-1)
    out = jnp.einsum("bhnm,bhmd->bhnd", attn, v)        # (B, H, N, Dh)
    out = out.transpose(0, 2, 1, 3).reshape(B, N, -1)   # (B, N, hidden)
    return out @ w_proj.T                               # (B, N, C)


if __name__ == "__main__":
    # Small shapes consistent with the module's forward: x (B, N, C).
    B, N, C = 2, 8, 32
    num_heads, head_dim = 4, 8
    hidden = num_heads * head_dim

    key = jax.random.PRNGKey(0)
    kx, kqkv, kproj = jax.random.split(key, 3)

    x = jax.random.normal(kx, (B, N, C), dtype=jnp.float32)
    # nn.Linear(dim, 3*hidden, bias=False): weight shape (3*hidden, dim)
    w_qkv = jax.random.normal(kqkv, (3 * hidden, C), dtype=jnp.float32) * (C ** -0.5)
    # nn.Linear(hidden, dim, bias=False): weight shape (dim, hidden)
    w_proj = jax.random.normal(kproj, (C, hidden), dtype=jnp.float32) * (hidden ** -0.5)

    ref = multi_head_attention_ref(x, w_qkv, w_proj,
                                   num_heads=num_heads, head_dim=head_dim)

    # f32 compute path: tight check (only approx-reciprocal / op-order differences).
    wq_f32, wo_f32 = prepare_mha_weights(w_qkv, w_proj, num_heads=num_heads,
                                         head_dim=head_dim, compute_dtype=jnp.float32)
    out_f32 = multi_head_attention(x, wq_f32, wo_f32,
                                   num_heads=num_heads, head_dim=head_dim)
    out_f32 = jax.block_until_ready(out_f32)
    assert out_f32.shape == (B, N, C)
    assert jnp.allclose(out_f32, ref, atol=1e-2, rtol=1e-2), "f32 kernel mismatch vs reference"

    # bf16 MXU path (default fast configuration): looser tolerance for bf16 rounding.
    wq_bf16, wo_bf16 = prepare_mha_weights(w_qkv, w_proj, num_heads=num_heads,
                                           head_dim=head_dim, compute_dtype=jnp.bfloat16)
    out_bf16 = multi_head_attention(x, wq_bf16, wo_bf16,
                                    num_heads=num_heads, head_dim=head_dim)
    out_bf16 = jax.block_until_ready(out_bf16)
    assert out_bf16.shape == (B, N, C)
    assert jnp.allclose(out_bf16, ref, atol=5e-2, rtol=5e-2), "bf16 kernel mismatch vs reference"

    print("KERNEL_OK")
</pallas_src>

<mosaic_0001>
module attributes {stable_mosaic.version = 11 : i64} {
  func.func @_mha_kernel(%arg0: i32, %arg1: memref<1x8x32xf32, #tpu.memory_space<vmem>>, %arg2: memref<32x96xf32, #tpu.memory_space<vmem>>, %arg3: memref<32x32xf32, #tpu.memory_space<vmem>>, %arg4: memref<1x8x32xf32, #tpu.memory_space<vmem>>, %arg5: memref<8x32xf32, #tpu.memory_space<vmem>>) attributes {dimension_semantics = [#tpu.dimension_semantics<parallel>], iteration_bounds = array<i64: 2>, scalar_prefetch = 0 : i64, scratch_operands = 1 : i64, tpu.core_type = #tpu.core_type<tc>, window_params = [{transform_indices = @transform_0, window_bounds = array<i64: 1, 8, 32>}, {pipeline_mode = #tpu.pipeline_mode<synchronous>, transform_indices = @transform_1, window_bounds = array<i64: 32, 96>}, {pipeline_mode = #tpu.pipeline_mode<synchronous>, transform_indices = @transform_2, window_bounds = array<i64: 32, 32>}, {transform_indices = @transform_3, window_bounds = array<i64: 1, 8, 32>}]} {
    %c0 = arith.constant 0 : index
    %c0_0 = arith.constant 0 : index
    %c0_1 = arith.constant 0 : index
    %0 = vector.load %arg1[%c0, %c0_0, %c0_1] : memref<1x8x32xf32, #tpu.memory_space<vmem>>, vector<1x8x32xf32>
    %1 = vector.shape_cast %0 : vector<1x8x32xf32> to vector<8x32xf32>
    %c0_2 = arith.constant 0 : index
    %c0_3 = arith.constant 0 : index
    %2 = vector.load %arg2[%c0_2, %c0_3] : memref<32x96xf32, #tpu.memory_space<vmem>>, vector<32x96xf32>
    %cst = arith.constant dense<0.000000e+00> : vector<8x96xf32>
    %3 = tpu.matmul %1, %2, %cst {dimension_numbers = #tpu.dot_dimension_numbers<[1], [0], [0], [1], [0, 0, 1, 1], [], []>} : vector<8x32xf32>, vector<32x96xf32>, vector<8x96xf32> -> vector<8x96xf32>
    %4 = vector.extract_strided_slice %3 {offsets = [0, 0], sizes = [8, 8], strides = [1, 1]} : vector<8x96xf32> to vector<8x8xf32>
    %5 = vector.extract_strided_slice %3 {offsets = [0, 32], sizes = [8, 8], strides = [1, 1]} : vector<8x96xf32> to vector<8x8xf32>
    %6 = vector.extract_strided_slice %3 {offsets = [0, 64], sizes = [8, 8], strides = [1, 1]} : vector<8x96xf32> to vector<8x8xf32>
    %cst_4 = arith.constant dense<0.000000e+00> : vector<8x8xf32>
    %7 = tpu.matmul %4, %5, %cst_4 {dimension_numbers = #tpu.dot_dimension_numbers<[1], [1], [0], [0], [0, 0, 1, 0], [], []>} : vector<8x8xf32>, vector<8x8xf32>, vector<8x8xf32> -> vector<8x8xf32>
    %cst_5 = arith.constant dense<0xFF800000> : vector<8xf32>
    %8 = vector.multi_reduction <maximumf>, %7, %cst_5 [1] : vector<8x8xf32> to vector<8xf32>
    %9 = vector.shape_cast %8 : vector<8xf32> to vector<8x1xf32>
    %10 = vector.broadcast %9 : vector<8x1xf32> to vector<8x8xf32>
    %11 = arith.subf %7, %10 : vector<8x8xf32>
    %12 = math.exp %11 : vector<8x8xf32>
    %cst_6 = arith.constant dense<0.000000e+00> : vector<8xf32>
    %13 = vector.multi_reduction <add>, %12, %cst_6 [1] : vector<8x8xf32> to vector<8xf32>
    %14 = vector.shape_cast %13 : vector<8xf32> to vector<8x1xf32>
    %15 = tpu.reciprocal %14 {approx = true} : vector<8x1xf32> -> vector<8x1xf32>
    %16 = vector.broadcast %15 : vector<8x1xf32> to vector<8x8xf32>
    %17 = arith.mulf %12, %16 : vector<8x8xf32>
    %cst_7 = arith.constant dense<0.000000e+00> : vector<8x8xf32>
    %18 = tpu.matmul %17, %6, %cst_7 {dimension_numbers = #tpu.dot_dimension_numbers<[1], [0], [0], [1], [0, 0, 1, 1], [], []>} : vector<8x8xf32>, vector<8x8xf32>, vector<8x8xf32> -> vector<8x8xf32>
    %c0_8 = arith.constant 0 : index
    %c0_9 = arith.constant 0 : index
    %19 = vector.load %arg5[%c0_8, %c0_9] : memref<8x32xf32, #tpu.memory_space<vmem>>, vector<8x8xf32>
    tpu.vector_store %arg5[%c0_8, %c0_9], %18 {strides = array<i32>} : memref<8x32xf32, #tpu.memory_space<vmem>>, vector<8x8xf32>,
    %20 = vector.extract_strided_slice %3 {offsets = [0, 8], sizes = [8, 8], strides = [1, 1]} : vector<8x96xf32> to vector<8x8xf32>
    %21 = vector.extract_strided_slice %3 {offsets = [0, 40], sizes = [8, 8], strides = [1, 1]} : vector<8x96xf32> to vector<8x8xf32>
    %22 = vector.extract_strided_slice %3 {offsets = [0, 72], sizes = [8, 8], strides = [1, 1]} : vector<8x96xf32> to vector<8x8xf32>
    %cst_10 = arith.constant dense<0.000000e+00> : vector<8x8xf32>
    %23 = tpu.matmul %20, %21, %cst_10 {dimension_numbers = #tpu.dot_dimension_numbers<[1], [1], [0], [0], [0, 0, 1, 0], [], []>} : vector<8x8xf32>, vector<8x8xf32>, vector<8x8xf32> -> vector<8x8xf32>
    %cst_11 = arith.constant dense<0xFF800000> : vector<8xf32>
    %24 = vector.multi_reduction <maximumf>, %23, %cst_11 [1] : vector<8x8xf32> to vector<8xf32>
    %25 = vector.shape_cast %24 : vector<8xf32> to vector<8x1xf32>
    %26 = vector.broadcast %25 : vector<8x1xf32> to vector<8x8xf32>
    %27 = arith.subf %23, %26 : vector<8x8xf32>
    %28 = math.exp %27 : vector<8x8xf32>
    %cst_12 = arith.constant dense<0.000000e+00> : vector<8xf32>
    %29 = vector.multi_reduction <add>, %28, %cst_12 [1] : vector<8x8xf32> to vector<8xf32>
    %30 = vector.shape_cast %29 : vector<8xf32> to vector<8x1xf32>
    %31 = tpu.reciprocal %30 {approx = true} : vector<8x1xf32> -> vector<8x1xf32>
    %32 = vector.broadcast %31 : vector<8x1xf32> to vector<8x8xf32>
    %33 = arith.mulf %28, %32 : vector<8x8xf32>
    %cst_13 = arith.constant dense<0.000000e+00> : vector<8x8xf32>
    %34 = tpu.matmul %33, %22, %cst_13 {dimension_numbers = #tpu.dot_dimension_numbers<[1], [0], [0], [1], [0, 0, 1, 1], [], []>} : vector<8x8xf32>, vector<8x8xf32>, vector<8x8xf32> -> vector<8x8xf32>
    %c0_14 = arith.constant 0 : index
    %c8 = arith.constant 8 : index
    %35 = vector.load %arg5[%c0_14, %c8] : memref<8x32xf32, #tpu.memory_space<vmem>>, vector<8x8xf32>
    tpu.vector_store %arg5[%c0_14, %c8], %34 {strides = array<i32>} : memref<8x32xf32, #tpu.memory_space<vmem>>, vector<8x8xf32>,
    %36 = vector.extract_strided_slice %3 {offsets = [0, 16], sizes = [8, 8], strides = [1, 1]} : vector<8x96xf32> to vector<8x8xf32>
    %37 = vector.extract_strided_slice %3 {offsets = [0, 48], sizes = [8, 8], strides = [1, 1]} : vector<8x96xf32> to vector<8x8xf32>
    %38 = vector.extract_strided_slice %3 {offsets = [0, 80], sizes = [8, 8], strides = [1, 1]} : vector<8x96xf32> to vector<8x8xf32>
    %cst_15 = arith.constant dense<0.000000e+00> : vector<8x8xf32>
    %39 = tpu.matmul %36, %37, %cst_15 {dimension_numbers = #tpu.dot_dimension_numbers<[1], [1], [0], [0], [0, 0, 1, 0], [], []>} : vector<8x8xf32>, vector<8x8xf32>, vector<8x8xf32> -> vector<8x8xf32>
    %cst_16 = arith.constant dense<0xFF800000> : vector<8xf32>
    %40 = vector.multi_reduction <maximumf>, %39, %cst_16 [1] : vector<8x8xf32> to vector<8xf32>
    %41 = vector.shape_cast %40 : vector<8xf32> to vector<8x1xf32>
    %42 = vector.broadcast %41 : vector<8x1xf32> to vector<8x8xf32>
    %43 = arith.subf %39, %42 : vector<8x8xf32>
    %44 = math.exp %43 : vector<8x8xf32>
    %cst_17 = arith.constant dense<0.000000e+00> : vector<8xf32>
    %45 = vector.multi_reduction <add>, %44, %cst_17 [1] : vector<8x8xf32> to vector<8xf32>
    %46 = vector.shape_cast %45 : vector<8xf32> to vector<8x1xf32>
    %47 = tpu.reciprocal %46 {approx = true} : vector<8x1xf32> -> vector<8x1xf32>
    %48 = vector.broadcast %47 : vector<8x1xf32> to vector<8x8xf32>
    %49 = arith.mulf %44, %48 : vector<8x8xf32>
    %cst_18 = arith.constant dense<0.000000e+00> : vector<8x8xf32>
    %50 = tpu.matmul %49, %38, %cst_18 {dimension_numbers = #tpu.dot_dimension_numbers<[1], [0], [0], [1], [0, 0, 1, 1], [], []>} : vector<8x8xf32>, vector<8x8xf32>, vector<8x8xf32> -> vector<8x8xf32>
    %c0_19 = arith.constant 0 : index
    %c16 = arith.constant 16 : index
    %51 = vector.load %arg5[%c0_19, %c16] : memref<8x32xf32, #tpu.memory_space<vmem>>, vector<8x8xf32>
    tpu.vector_store %arg5[%c0_19, %c16], %50 {strides = array<i32>} : memref<8x32xf32, #tpu.memory_space<vmem>>, vector<8x8xf32>,
    %52 = vector.extract_strided_slice %3 {offsets = [0, 24], sizes = [8, 8], strides = [1, 1]} : vector<8x96xf32> to vector<8x8xf32>
    %53 = vector.extract_strided_slice %3 {offsets = [0, 56], sizes = [8, 8], strides = [1, 1]} : vector<8x96xf32> to vector<8x8xf32>
    %54 = vector.extract_strided_slice %3 {offsets = [0, 88], sizes = [8, 8], strides = [1, 1]} : vector<8x96xf32> to vector<8x8xf32>
    %cst_20 = arith.constant dense<0.000000e+00> : vector<8x8xf32>
    %55 = tpu.matmul %52, %53, %cst_20 {dimension_numbers = #tpu.dot_dimension_numbers<[1], [1], [0], [0], [0, 0, 1, 0], [], []>} : vector<8x8xf32>, vector<8x8xf32>, vector<8x8xf32> -> vector<8x8xf32>
    %cst_21 = arith.constant dense<0xFF800000> : vector<8xf32>
    %56 = vector.multi_reduction <maximumf>, %55, %cst_21 [1] : vector<8x8xf32> to vector<8xf32>
    %57 = vector.shape_cast %56 : vector<8xf32> to vector<8x1xf32>
    %58 = vector.broadcast %57 : vector<8x1xf32> to vector<8x8xf32>
    %59 = arith.subf %55, %58 : vector<8x8xf32>
    %60 = math.exp %59 : vector<8x8xf32>
    %cst_22 = arith.constant dense<0.000000e+00> : vector<8xf32>
    %61 = vector.multi_reduction <add>, %60, %cst_22 [1] : vector<8x8xf32> to vector<8xf32>
    %62 = vector.shape_cast %61 : vector<8xf32> to vector<8x1xf32>
    %63 = tpu.reciprocal %62 {approx = true} : vector<8x1xf32> -> vector<8x1xf32>
    %64 = vector.broadcast %63 : vector<8x1xf32> to vector<8x8xf32>
    %65 = arith.mulf %60, %64 : vector<8x8xf32>
    %cst_23 = arith.constant dense<0.000000e+00> : vector<8x8xf32>
    %66 = tpu.matmul %65, %54, %cst_23 {dimension_numbers = #tpu.dot_dimension_numbers<[1], [0], [0], [1], [0, 0, 1, 1], [], []>} : vector<8x8xf32>, vector<8x8xf32>, vector<8x8xf32> -> vector<8x8xf32>
    %c0_24 = arith.constant 0 : index
    %c24 = arith.constant 24 : index
    %67 = vector.load %arg5[%c0_24, %c24] : memref<8x32xf32, #tpu.memory_space<vmem>>, vector<8x8xf32>
    tpu.vector_store %arg5[%c0_24, %c24], %66 {strides = array<i32>} : memref<8x32xf32, #tpu.memory_space<vmem>>, vector<8x8xf32>,
    %c0_25 = arith.constant 0 : index
    %c0_26 = arith.constant 0 : index
    %68 = vector.load %arg5[%c0_25, %c0_26] : memref<8x32xf32, #tpu.memory_space<vmem>>, vector<8x32xf32>
    %c0_27 = arith.constant 0 : index
    %c0_28 = arith.constant 0 : index
    %69 = vector.load %arg3[%c0_27, %c0_28] : memref<32x32xf32, #tpu.memory_space<vmem>>, vector<32x32xf32>
    %cst_29 = arith.constant dense<0.000000e+00> : vector<8x32xf32>
    %70 = tpu.matmul %68, %69, %cst_29 {dimension_numbers = #tpu.dot_dimension_numbers<[1], [0], [0], [1], [0, 0, 1, 1], [], []>} : vector<8x32xf32>, vector<32x32xf32>, vector<8x32xf32> -> vector<8x32xf32>
    %c0_30 = arith.constant 0 : index
    %c0_31 = arith.constant 0 : index
    %c0_32 = arith.constant 0 : index
    %71 = vector.load %arg4[%c0_30, %c0_31, %c0_32] : memref<1x8x32xf32, #tpu.memory_space<vmem>>, vector<1x8x32xf32>
    %72 = vector.shape_cast %71 : vector<1x8x32xf32> to vector<8x32xf32>
    %73 = vector.shape_cast %70 : vector<8x32xf32> to vector<1x8x32xf32>
    tpu.vector_store %arg4[%c0_30, %c0_31, %c0_32], %73 {strides = array<i32>} : memref<1x8x32xf32, #tpu.memory_space<vmem>>, vector<1x8x32xf32>,
    return
  }
  func.func @transform_0(%arg0: i32) -> (i32, i32, i32) {
    %c0_i32 = arith.constant 0 : i32
    %c0_i32_0 = arith.constant 0 : i32
    %c0_i32_1 = arith.constant 0 : i32
    return %arg0, %c0_i32, %c0_i32_0 : i32, i32, i32
  }
  func.func @transform_1(%arg0: i32) -> (i32, i32) {
    %c0_i32 = arith.constant 0 : i32
    %c0_i32_0 = arith.constant 0 : i32
    %c0_i32_1 = arith.constant 0 : i32
    return %c0_i32, %c0_i32_0 : i32, i32
  }
  func.func @transform_2(%arg0: i32) -> (i32, i32) {
    %c0_i32 = arith.constant 0 : i32
    %c0_i32_0 = arith.constant 0 : i32
    %c0_i32_1 = arith.constant 0 : i32
    return %c0_i32, %c0_i32_0 : i32, i32
  }
  func.func @transform_3(%arg0: i32) -> (i32, i32, i32) {
    %c0_i32 = arith.constant 0 : i32
    %c0_i32_0 = arith.constant 0 : i32
    %c0_i32_1 = arith.constant 0 : i32
    return %arg0, %c0_i32, %c0_i32_0 : i32, i32, i32
  }
}

</mosaic_0001>

<llo_original>
// kernel: multi_head_attention.1
$region0: #{multi_head_attention.1}
  #allocation0 [shape = 'u32[]', space=smem, size = 0x4, offset = 0x4, fixed_abs, tag = 'smem constant byte address 0x4 - core index']
  #allocation1 [shape = 'u32[144,128]{1,0:T(1,128)}', space=vmem, size = 0x12000, scoped, tag = 'internal scratch']
  #allocation2 [shape = 'f32[8,32]{1,0:T(8,128)}', space=vmem, size = 0x1000, scoped, tag = 'scratch operand']
  %s0 = inlined_call_operand.hbm [shape: f32[2,8,32], index: 0, kind: input, shape index: {}]
  %s1 = inlined_call_operand.hbm [shape: f32[32,96], index: 1, kind: input, shape index: {}]
  %s2 = inlined_call_operand.hbm [shape: f32[32,32], index: 2, kind: input, shape index: {}]
  %s3 = inlined_call_operand.hbm [shape: f32[2,8,32], index: 3, kind: output, shape index: {}]
  %s4 = sld [smem:[#allocation0]]
  $region57: #{multi_head_attention.1} parent=0
    _
  %s6 = ssub.s32 1, %s4
  %s7 = scalar_select 0, %s6, %s4
  $region1: #{multi_head_attention.1} parent=0
    #allocation3 [shape = 'u8[8192]{0}', space=vmem, size = 0x2000, scoped, tag = 'input window, operand 0']
    #allocation4 [shape = 's32[2]{0}', space=sflag, size = 0x8, scoped, tag = 'scoped memory for multi_head_attention.1']
    #allocation5 [shape = 's32[2]{0}', space=sflag, size = 0x8, scoped, tag = 'scoped memory for multi_head_attention.1']
    #allocation6 [shape = 'u8[16384]{0}', space=vmem, size = 0x4000, scoped, tag = 'input window, operand 1, single buffered']
    #allocation7 [shape = 's32[1]{0}', space=sflag, size = 0x4, scoped, tag = 'scoped memory for multi_head_attention.1']
    #allocation8 [shape = 'u8[16384]{0}', space=vmem, size = 0x4000, scoped, tag = 'input window, operand 2, single buffered']
    #allocation9 [shape = 'u8[8192]{0}', space=vmem, size = 0x2000, scoped, tag = 'output window, operand 0']
    %8 = vsyncpa [#allocation4], 0
    %s9 = scalar_lea.sflag [#allocation4], 1
    %10 = vsyncpa %s9, 0
    %11 = vsyncpa [#allocation7], 0
    %12 = vsyncpa [#allocation5], 0
    %s13 = scalar_lea.sflag [#allocation5], 1
    %14 = vsyncpa %s13, 0
    loop: start=0, step=1, limit=4
    $region2: #{multi_head_attention.1} parent=1 // loop_pre_header
      _
    $region3: #{multi_head_attention.1} parent=1 // loop_header
      %s16 = sphi 0, %s20
      %p17 = scmp.ge.s32.totalorder %s16, 4
      %s26 = sphi 0, %s28
      %s29 = sphi 0, %s26
      %s30 = sphi 0, %s29
      %s46 = sphi 0, %s30
      %s50 = sphi 0, %s50
      %s52 = sphi 0, %s50
      %s53 = sphi 0, %s52
      %s67 = sphi 0, %s53
      %s71 = sphi 0, %s71
      %s73 = sphi 0, %s71
      %s74 = sphi 0, %s73
      %s88 = sphi 0, %s74
      %s94 = sphi 0, %s96
      %s97 = sphi 0, %s94
      %s98 = sphi 0, %s97
      %s114 = sphi 0, %s98
    $region4: #{multi_head_attention.1} parent=1 // loop_header_branch
      %19 = sbr.rel (%p17) target = $region8
    $region5: #{multi_head_attention.1} parent=1 // loop_body
      %s21 = ssub.s32 %s16, 1
      %s22 = ssub.s32 %s16, 2
      %s23 = sadd.s32 %s16, 1
      %s24 = ssub.s32 %s16, %s23
      %p25 = scmp.eq.s32.totalorder %s24, 0
      %s27 = sadd.s32 %s26, 1
      %s28 = scalar_select %p25, %s26, %s27
      %p31 = pneg %p25
      %p32 = scmp.eq.s32.totalorder %s16, 1
      %p33 = por %p31, %p32
      %p34 = scmp.ne.s32.totalorder %s26, %s29
      %p35 = scmp.eq.s32.totalorder %s16, 0
      %p36 = por %p34, %p35
      %p37 = scmp.ne.s32.totalorder %s26, %s29
      %p38 = scmp.eq.s32.totalorder %s21, 1
      %p39 = por %p37, %p38
      %p40 = scmp.ne.s32.totalorder %s29, %s30
      %p41 = scmp.eq.s32.totalorder %s21, 0
      %p42 = por %p40, %p41
      %p43 = scmp.ne.s32.totalorder %s29, %s30
      %p44 = scmp.eq.s32.totalorder %s22, 1
      %p45 = por %p43, %p44
      %p47 = scmp.ne.s32.totalorder %s30, %s46
      %p48 = scmp.eq.s32.totalorder %s22, 0
      %p49 = por %p47, %p48
      %s51 = sadd.s32 %s50, 1
      %p54 = scmp.eq.s32.totalorder %s16, 1
      %p55 = scmp.ne.s32.totalorder %s50, %s52
      %p56 = scmp.eq.s32.totalorder %s16, 0
      %p57 = por %p55, %p56
      %p58 = scmp.ne.s32.totalorder %s50, %s52
      %p59 = scmp.eq.s32.totalorder %s21, 1
      %p60 = por %p58, %p59
      %p61 = scmp.ne.s32.totalorder %s52, %s53
      %p62 = scmp.eq.s32.totalorder %s21, 0
      %p63 = por %p61, %p62
      %p64 = scmp.ne.s32.totalorder %s52, %s53
      %p65 = scmp.eq.s32.totalorder %s22, 1
      %p66 = por %p64, %p65
      %p68 = scmp.ne.s32.totalorder %s53, %s67
      %p69 = scmp.eq.s32.totalorder %s22, 0
      %p70 = por %p68, %p69
      %s72 = sadd.s32 %s71, 1
      %p75 = scmp.eq.s32.totalorder %s16, 1
      %p76 = scmp.ne.s32.totalorder %s71, %s73
      %p77 = scmp.eq.s32.totalorder %s16, 0
      %p78 = por %p76, %p77
      %p79 = scmp.ne.s32.totalorder %s71, %s73
      %p80 = scmp.eq.s32.totalorder %s21, 1
      %p81 = por %p79, %p80
      %p82 = scmp.ne.s32.totalorder %s73, %s74
      %p83 = scmp.eq.s32.totalorder %s21, 0
      %p84 = por %p82, %p83
      %p85 = scmp.ne.s32.totalorder %s73, %s74
      %p86 = scmp.eq.s32.totalorder %s22, 1
      %p87 = por %p85, %p86
      %p89 = scmp.ne.s32.totalorder %s74, %s88
      %p90 = scmp.eq.s32.totalorder %s22, 0
      %p91 = por %p89, %p90
      %s92 = ssub.s32 %s16, %s23
      %p93 = scmp.eq.s32.totalorder %s92, 0
      %s95 = sadd.s32 %s94, 1
      %s96 = scalar_select %p93, %s94, %s95
      %p99 = pneg %p93
      %p100 = scmp.eq.s32.totalorder %s16, 1
      %p101 = por %p99, %p100
      %p102 = scmp.ne.s32.totalorder %s94, %s97
      %p103 = scmp.eq.s32.totalorder %s16, 0
      %p104 = por %p102, %p103
      %p105 = scmp.ne.s32.totalorder %s94, %s97
      %p106 = scmp.eq.s32.totalorder %s21, 1
      %p107 = por %p105, %p106
      %p108 = scmp.ne.s32.totalorder %s97, %s98
      %p109 = scmp.eq.s32.totalorder %s21, 0
      %p110 = por %p108, %p109
      %p111 = scmp.ne.s32.totalorder %s97, %s98
      %p112 = scmp.eq.s32.totalorder %s22, 1
      %p113 = por %p111, %p112
      %p115 = scmp.ne.s32.totalorder %s98, %s114
      %p116 = scmp.eq.s32.totalorder %s22, 0
      %p117 = por %p115, %p116
      %p118 = scmp.le.s32.totalorder 1, %s16
      %p119 = scmp.lt.s32.totalorder %s16, 3
      %p120 = pnand %p118, %p119
      %p121 = pneg %p120
      // Predicated region
      $region9: #{multi_head_attention.1} parent=5 // pred_check
        _
      $region10: #{multi_head_attention.1} parent=5 // pred_check_branch
        %123 = sbr.rel (%p120) target = $region12
      $region11: #{multi_head_attention.1} parent=5 // pred_region
        %s124 = ssub.s32 %s16, 1
        // Predicated region
        $region13: #{multi_head_attention.1} parent=11 // pred_check
          %p125 = pneg %p63
        $region14: #{multi_head_attention.1} parent=11 // pred_check_branch
          %127 = sbr.rel (%p125) target = $region16
        $region15: #{multi_head_attention.1} parent=11 // pred_region
          %s129 = ssub.s32 512, 512
          %130 = vsyncadd [#allocation7], %s129
          %s131 = sshll.u32 [#allocation6], 4
          %s132 = int_to_ptr.vmem [resolvable:$true] %s131
          %137 = dma.hbm_to_vmem [thread:$0]  %s1, 512, %s132, [#allocation7], 128, 128, 8
        $region16: #{multi_head_attention.1} parent=11 // pred_fallthru
          _
        // Predicated region
        $region17: #{multi_head_attention.1} parent=11 // pred_check
          %p138 = pneg %p84
        $region18: #{multi_head_attention.1} parent=11 // pred_check_branch
          %140 = sbr.rel (%p138) target = $region20
        $region19: #{multi_head_attention.1} parent=11 // pred_region
          %s142 = ssub.s32 512, 512
          %143 = vsyncadd [#allocation7], %s142
          %s144 = sshll.u32 [#allocation8], 4
          %s145 = int_to_ptr.vmem [resolvable:$true] %s144
          %150 = dma.hbm_to_vmem [thread:$0]  %s2, 512, %s145, [#allocation7], 128, 128, 8
        $region20: #{multi_head_attention.1} parent=11 // pred_fallthru
          _
      $region12: #{multi_head_attention.1} parent=5 // pred_fallthru
        _
      %p151 = scmp.lt.s32.totalorder %s16, 2
      // Predicated region
      $region21: #{multi_head_attention.1} parent=5 // pred_check
        %p152 = pneg %p151
      $region22: #{multi_head_attention.1} parent=5 // pred_check_branch
        %154 = sbr.rel (%p152) target = $region24
      $region23: #{multi_head_attention.1} parent=5 // pred_region
        // Predicated region
        $region25: #{multi_head_attention.1} parent=23 // pred_check
          %p155 = pneg %p36
        $region26: #{multi_head_attention.1} parent=23 // pred_check_branch
          %157 = sbr.rel (%p155) target = $region28
        $region27: #{multi_head_attention.1} parent=23 // pred_region
          %s158 = sand.u32 %s26, 1
          %s159 = scalar_lea.sflag [#allocation4], %s158
          %s160 = sand.u32 %s26, 1
          %s161 = smul.addr %s160, 8
          %s162 = scalar_lea.vmem [#allocation3], %s161
          %s164 = ssub.s32 128, 128
          %165 = vsyncadd %s159, %s164
          %s166 = smul.addr %s16, 128
          %s167 = scalar_lea.hbm %s0, %s166
          %s169 = sshll.u32 %s162, 4
          %s170 = int_to_ptr.vmem [resolvable:$true] %s169
          %172 = dma.hbm_to_vmem [thread:$0]  %s167, 128, %s170, %s159
        $region28: #{multi_head_attention.1} parent=23 // pred_fallthru
          _
      $region24: #{multi_head_attention.1} parent=5 // pred_fallthru
        _
      %p173 = scmp.le.s32.totalorder 1, %s16
      %p174 = scmp.lt.s32.totalorder %s16, 3
      %p175 = pnand %p173, %p174
      %p176 = pneg %p175
      // Predicated region
      $region29: #{multi_head_attention.1} parent=5 // pred_check
        _
      $region30: #{multi_head_attention.1} parent=5 // pred_check_branch
        %178 = sbr.rel (%p175) target = $region32
      $region31: #{multi_head_attention.1} parent=5 // pred_region
        %s179 = ssub.s32 %s16, 1
        %s180 = sand.u32 %s29, 1
        %s181 = scalar_lea.sflag [#allocation4], %s180
        %s182 = sand.u32 %s29, 1
        %s183 = smul.addr %s182, 8
        %s184 = scalar_lea.vmem [#allocation3], %s183
        // Predicated region
        $region33: #{multi_head_attention.1} parent=31 // pred_check
          %p185 = pneg %p42
        $region34: #{multi_head_attention.1} parent=31 // pred_check_branch
          %187 = sbr.rel (%p185) target = $region36
        $region35: #{multi_head_attention.1} parent=31 // pred_region
          %188 = dma.done %s181, 128
        $region36: #{multi_head_attention.1} parent=31 // pred_fallthru
          _
        // Predicated region
        $region37: #{multi_head_attention.1} parent=31 // pred_check
          %p189 = pneg %p63
        $region38: #{multi_head_attention.1} parent=31 // pred_check_branch
          %191 = sbr.rel (%p189) target = $region40
        $region39: #{multi_head_attention.1} parent=31 // pred_region
          %192 = dma.done [#allocation7], 512
        $region40: #{multi_head_attention.1} parent=31 // pred_fallthru
          _
        // Predicated region
        $region41: #{multi_head_attention.1} parent=31 // pred_check
          %p193 = pneg %p84
        $region42: #{multi_head_attention.1} parent=31 // pred_check_branch
          %195 = sbr.rel (%p193) target = $region44
        $region43: #{multi_head_attention.1} parent=31 // pred_region
          %196 = dma.done [#allocation7], 512
        $region44: #{multi_head_attention.1} parent=31 // pred_fallthru
          _
        %s197 = sand.u32 %s29, 1
        %s198 = scalar_lea.sflag [#allocation4], %s197
        %s199 = sand.u32 %s29, 1
        %s200 = smul.addr %s199, 8
        %s201 = scalar_lea.vmem [#allocation3], %s200
        %p202 = pneg %p42
        %p203 = pneg %p39
        %p204 = pneg %p63
        %p205 = pneg %p60
        %p206 = pneg %p84
        %p207 = pneg %p81
        %p208 = pneg %p110
        %p209 = pneg %p107
        %s210 = sand.u32 %s97, 1
        %s211 = scalar_lea.sflag [#allocation5], %s210
        %s212 = sand.u32 %s97, 1
        %s213 = smul.addr %s212, 8
        %s214 = scalar_lea.vmem [#allocation9], %s213
        %v215 = vld [vmem:[%s184] sm:$0xff]
        %v216 = vld [vmem:[#allocation6] sm:$0xff]
        %v217 = vld [vmem:[#allocation6 + $0x8] sm:$0xff]
        %v218 = vld [vmem:[#allocation6 + $0x10] sm:$0xff]
        %v219 = vld [vmem:[#allocation6 + $0x18] sm:$0xff]
        %vm220 = vcmask 261120
        %v222 = vsel %vm220, %v215, 0
        %224 = vmatprep.subr.mxu0 0.0
        %225 = vmatpush1.msra.mxu0 %v216
        %226 = vmatprep.subr.mxu0 0.0
        %227 = vmatpush1.msra.mxu0 %v217
        %228 = vmatprep.subr.mxu0 0.0
        %229 = vmatpush1.msra.mxu0 %v218
        %230 = vmatprep.subr.mxu0 0.0
        %231 = vmatpush1.msra.mxu0 %v219
        %232 = vmatprep.subr.mxu0 0.0
        %233 = vmatpush1.msra.mxu0 0.0
        %234 = vmatprep.subr.mxu0 0.0
        %235 = vmatpush1.msra.mxu0 0.0
        %236 = vmatprep.subr.mxu0 0.0
        %237 = vmatpush1.msra.mxu0 0.0
        %238 = vmatprep.subr.mxu0 0.0
        %239 = vmatpush1.msra.mxu0 0.0
        %240 = vmatprep.subr.mxu0 0.0
        %241 = vmatpush1.msra.mxu0 0.0
        %242 = vmatprep.subr.mxu0 0.0
        %243 = vmatpush1.msra.mxu0 0.0
        %244 = vmatprep.subr.mxu0 0.0
        %245 = vmatpush1.msra.mxu0 0.0
        %246 = vmatprep.subr.mxu0 0.0
        %247 = vmatpush1.msra.mxu0 0.0
        %248 = vmatprep.subr.mxu0 0.0
        %249 = vmatpush1.msra.mxu0 0.0
        %250 = vmatprep.subr.mxu0 0.0
        %251 = vmatpush1.msra.mxu0 0.0
        %252 = vmatprep.subr.mxu0 0.0
        %253 = vmatpush1.msra.mxu0 0.0
        %254 = vmatprep.subr.mxu0 0.0
        %255 = vmatpush1.msra.mxu0 0.0
        %256 = vmatprep.subr.mxu0 0.0
        %257 = vmatpush1.msra.mxu0 0.0
        %258 = vmatprep.subr.mxu0 0.0
        %259 = vmatpush1.msra.mxu0 0.0
        %260 = vmatprep.subr.mxu0 0.0
        %261 = vmatpush1.msra.mxu0 0.0
        %262 = vmatprep.subr.mxu0 0.0
        %263 = vmatpush1.msra.mxu0 0.0
        %264 = vmatprep.subr.mxu0 0.0
        %265 = vmatpush1.msra.mxu0 0.0
        %266 = vmatprep.subr.mxu0 0.0
        %267 = vmatpush1.msra.mxu0 0.0
        %268 = vmatprep.subr.mxu0 0.0
        %269 = vmatpush1.msra.mxu0 0.0
        %270 = vmatprep.subr.mxu0 0.0
        %271 = vmatpush1.msra.mxu0 0.0
        %272 = vmatprep.subr.mxu0 0.0
        %273 = vmatpush1.msra.mxu0 0.0
        %274 = vmatprep.subr.mxu0 0.0
        %275 = vmatpush1.msra.mxu0 0.0
        %276 = vmatprep.subr.mxu0 0.0
        %277 = vmatpush1.msra.mxu0 0.0
        %278 = vmatprep.subr.mxu0 0.0
        %279 = vmatpush1.msra.mxu0 0.0
        %280 = vmatprep.subr.mxu0 0.0
        %281 = vmatpush1.msra.mxu0 0.0
        %282 = vmatprep.subr.mxu0 0.0
        %283 = vmatpush1.msra.mxu0 0.0
        %284 = vmatprep.subr.mxu0 0.0
        %285 = vmatpush1.msra.mxu0 0.0
        %286 = vmatprep.subr.mxu0 0.0
        %287 = vmatpush1.msra.mxu0 0.0
        %288 = vmatprep.mubr.f32.mxu0 0.0
        %289 = vmatmul.mubr.f32.gmra.mrb[0].mxu0 %v222
        %v290 = vpop.f32.mrb[0].mxu0
        %v291 = vadd.f32 0.0, %v290
        %v292 = vpop.f32.mrb[0].mxu0
        %293 = vdwg.mxu0
        %295 = vrot.lane.b32.xlu0 %v291, 96
        %v296 = vpop.permute.xlu0 %295
        %vm297 = vcmask 64512
        %v298 = vsel %vm297, %v291, 0
        %v300 = vsel %vm297, %v296, 0
        %302 = vmatprep.subr.mxu0 0.0
        %303 = vmatpush1.xpose.msra.mxu0 %v300
        %304 = vmatprep.subr.mxu0 0.0
        %305 = vmatpush1.xpose.msra.mxu0 0.0
        %306 = vmatprep.subr.mxu0 0.0
        %307 = vmatpush1.xpose.msra.mxu0 0.0
        %308 = vmatprep.subr.mxu0 0.0
        %309 = vmatpush1.xpose.msra.mxu0 0.0
        %310 = vmatprep.subr.mxu0 0.0
        %311 = vmatpush1.xpose.msra.mxu0 0.0
        %312 = vmatprep.subr.mxu0 0.0
        %313 = vmatpush1.xpose.msra.mxu0 0.0
        %314 = vmatprep.subr.mxu0 0.0
        %315 = vmatpush1.xpose.msra.mxu0 0.0
        %316 = vmatprep.subr.mxu0 0.0
        %317 = vmatpush1.xpose.msra.mxu0 0.0
        %318 = vmatprep.subr.mxu0 0.0
        %319 = vmatpush1.xpose.msra.mxu0 0.0
        %320 = vmatprep.subr.mxu0 0.0
        %321 = vmatpush1.xpose.msra.mxu0 0.0
        %322 = vmatprep.subr.mxu0 0.0
        %323 = vmatpush1.xpose.msra.mxu0 0.0
        %324 = vmatprep.subr.mxu0 0.0
        %325 = vmatpush1.xpose.msra.mxu0 0.0
        %326 = vmatprep.subr.mxu0 0.0
        %327 = vmatpush1.xpose.msra.mxu0 0.0
        %328 = vmatprep.subr.mxu0 0.0
        %329 = vmatpush1.xpose.msra.mxu0 0.0
        %330 = vmatprep.subr.mxu0 0.0
        %331 = vmatpush1.xpose.msra.mxu0 0.0
        %332 = vmatprep.subr.mxu0 0.0
        %333 = vmatpush1.xpose.msra.mxu0 0.0
        %334 = vmatprep.subr.mxu0 0.0
        %335 = vmatpush1.xpose.msra.mxu0 0.0
        %336 = vmatprep.subr.mxu0 0.0
        %337 = vmatpush1.xpose.msra.mxu0 0.0
        %338 = vmatprep.subr.mxu0 0.0
        %339 = vmatpush1.xpose.msra.mxu0 0.0
        %340 = vmatprep.subr.mxu0 0.0
        %341 = vmatpush1.xpose.msra.mxu0 0.0
        %342 = vmatprep.subr.mxu0 0.0
        %343 = vmatpush1.xpose.msra.mxu0 0.0
        %344 = vmatprep.subr.mxu0 0.0
        %345 = vmatpush1.xpose.msra.mxu0 0.0
        %346 = vmatprep.subr.mxu0 0.0
        %347 = vmatpush1.xpose.msra.mxu0 0.0
        %348 = vmatprep.subr.mxu0 0.0
        %349 = vmatpush1.xpose.msra.mxu0 0.0
        %350 = vmatprep.subr.mxu0 0.0
        %351 = vmatpush1.xpose.msra.mxu0 0.0
        %352 = vmatprep.subr.mxu0 0.0
        %353 = vmatpush1.xpose.msra.mxu0 0.0
        %354 = vmatprep.subr.mxu0 0.0
        %355 = vmatpush1.xpose.msra.mxu0 0.0
        %356 = vmatprep.subr.mxu0 0.0
        %357 = vmatpush1.xpose.msra.mxu0 0.0
        %358 = vmatprep.subr.mxu0 0.0
        %359 = vmatpush1.xpose.msra.mxu0 0.0
        %360 = vmatprep.subr.mxu0 0.0
        %361 = vmatpush1.xpose.msra.mxu0 0.0
        %362 = vmatprep.subr.mxu0 0.0
        %363 = vmatpush1.xpose.msra.mxu0 0.0
        %364 = vmatprep.subr.mxu0 0.0
        %365 = vmatpush1.xpose.msra.mxu0 0.0
        %366 = vmatprep.mubr.f32.mxu0 0.0
        %367 = vmatmul.mubr.f32.gmra.mrb[0].mxu0 %v298
        %v368 = vpop.f32.mrb[0].mxu0
        %v369 = vadd.f32 0.0, %v368
        %v370 = vpop.f32.mrb[0].mxu0
        %371 = vdwg.mxu0
        %v372 = vsel %vm297, %v369, -inf
        %373 = vmax.xlane.f32.xlu0 %v372
        %v374 = vpop.xlane.xlu0 %373
        %v375 = vsub.f32 %v369, %v374
        %v376 = vmul.f32 %v375, 1.442695
        %v377 = vpow.pop %v376
        %v378 = vsel %vm297, %v377, 0.0
        %379 = vadd.xlane.f32.xlu0 %v378
        %v380 = vpop.xlane.xlu0 %379
        %v381 = vrcp.pop %v380
        %v382 = vmul.f32 %v377, %v381
        %383 = vrot.lane.b32.xlu0 %v291, 64
        %v384 = vpop.permute.xlu0 %383
        %v387 = vsel %vm297, %v382, 0
        %389 = vmatprep.subr.mxu0 0.0
        %390 = vmatpush1.msra.mxu0 %v384
        %391 = vmatprep.subr.mxu0 0.0
        %392 = vmatpush1.msra.mxu0 0.0
        %393 = vmatprep.subr.mxu0 0.0
        %394 = vmatpush1.msra.mxu0 0.0
        %395 = vmatprep.subr.mxu0 0.0
        %396 = vmatpush1.msra.mxu0 0.0
        %397 = vmatprep.subr.mxu0 0.0
        %398 = vmatpush1.msra.mxu0 0.0
        %399 = vmatprep.subr.mxu0 0.0
        %400 = vmatpush1.msra.mxu0 0.0
        %401 = vmatprep.subr.mxu0 0.0
        %402 = vmatpush1.msra.mxu0 0.0
        %403 = vmatprep.subr.mxu0 0.0
        %404 = vmatpush1.msra.mxu0 0.0
        %405 = vmatprep.subr.mxu0 0.0
        %406 = vmatpush1.msra.mxu0 0.0
        %407 = vmatprep.subr.mxu0 0.0
        %408 = vmatpush1.msra.mxu0 0.0
        %409 = vmatprep.subr.mxu0 0.0
        %410 = vmatpush1.msra.mxu0 0.0
        %411 = vmatprep.subr.mxu0 0.0
        %412 = vmatpush1.msra.mxu0 0.0
        %413 = vmatprep.subr.mxu0 0.0
        %414 = vmatpush1.msra.mxu0 0.0
        %415 = vmatprep.subr.mxu0 0.0
        %416 = vmatpush1.msra.mxu0 0.0
        %417 = vmatprep.subr.mxu0 0.0
        %418 = vmatpush1.msra.mxu0 0.0
        %419 = vmatprep.subr.mxu0 0.0
        %420 = vmatpush1.msra.mxu0 0.0
        %421 = vmatprep.subr.mxu0 0.0
        %422 = vmatpush1.msra.mxu0 0.0
        %423 = vmatprep.subr.mxu0 0.0
        %424 = vmatpush1.msra.mxu0 0.0
        %425 = vmatprep.subr.mxu0 0.0
        %426 = vmatpush1.msra.mxu0 0.0
        %427 = vmatprep.subr.mxu0 0.0
        %428 = vmatpush1.msra.mxu0 0.0
        %429 = vmatprep.subr.mxu0 0.0
        %430 = vmatpush1.msra.mxu0 0.0
        %431 = vmatprep.subr.mxu0 0.0
        %432 = vmatpush1.msra.mxu0 0.0
        %433 = vmatprep.subr.mxu0 0.0
        %434 = vmatpush1.msra.mxu0 0.0
        %435 = vmatprep.subr.mxu0 0.0
        %436 = vmatpush1.msra.mxu0 0.0
        %437 = vmatprep.subr.mxu0 0.0
        %438 = vmatpush1.msra.mxu0 0.0
        %439 = vmatprep.subr.mxu0 0.0
        %440 = vmatpush1.msra.mxu0 0.0
        %441 = vmatprep.subr.mxu0 0.0
        %442 = vmatpush1.msra.mxu0 0.0
        %443 = vmatprep.subr.mxu0 0.0
        %444 = vmatpush1.msra.mxu0 0.0
        %445 = vmatprep.subr.mxu0 0.0
        %446 = vmatpush1.msra.mxu0 0.0
        %447 = vmatprep.subr.mxu0 0.0
        %448 = vmatpush1.msra.mxu0 0.0
        %449 = vmatprep.subr.mxu0 0.0
        %450 = vmatpush1.msra.mxu0 0.0
        %451 = vmatprep.subr.mxu0 0.0
        %452 = vmatpush1.msra.mxu0 0.0
        %453 = vmatprep.mubr.f32.mxu0 0.0
        %454 = vmatmul.mubr.f32.gmra.mrb[0].mxu0 %v387
        %v455 = vpop.f32.mrb[0].mxu0
        %v456 = vadd.f32 0.0, %v455
        %v457 = vpop.f32.mrb[0].mxu0
        %458 = vdwg.mxu0
        %459 = vst.msk [vmem:[#allocation2] sm:$0xff] %vm297, %v456
        %460 = vrot.lane.b32.xlu0 %v291, 120
        %v461 = vpop.permute.xlu0 %460
        %462 = vrot.lane.b32.xlu0 %v291, 88
        %v463 = vpop.permute.xlu0 %462
        %v464 = vsel %vm297, %v461, 0
        %v466 = vsel %vm297, %v463, 0
        %468 = vmatprep.subr.mxu0 0.0
        %469 = vmatpush1.xpose.msra.mxu0 %v466
        %470 = vmatprep.subr.mxu0 0.0
        %471 = vmatpush1.xpose.msra.mxu0 0.0
        %472 = vmatprep.subr.mxu0 0.0
        %473 = vmatpush1.xpose.msra.mxu0 0.0
        %474 = vmatprep.subr.mxu0 0.0
        %475 = vmatpush1.xpose.msra.mxu0 0.0
        %476 = vmatprep.subr.mxu0 0.0
        %477 = vmatpush1.xpose.msra.mxu0 0.0
        %478 = vmatprep.subr.mxu0 0.0
        %479 = vmatpush1.xpose.msra.mxu0 0.0
        %480 = vmatprep.subr.mxu0 0.0
        %481 = vmatpush1.xpose.msra.mxu0 0.0
        %482 = vmatprep.subr.mxu0 0.0
        %483 = vmatpush1.xpose.msra.mxu0 0.0
        %484 = vmatprep.subr.mxu0 0.0
        %485 = vmatpush1.xpose.msra.mxu0 0.0
        %486 = vmatprep.subr.mxu0 0.0
        %487 = vmatpush1.xpose.msra.mxu0 0.0
        %488 = vmatprep.subr.mxu0 0.0
        %489 = vmatpush1.xpose.msra.mxu0 0.0
        %490 = vmatprep.subr.mxu0 0.0
        %491 = vmatpush1.xpose.msra.mxu0 0.0
        %492 = vmatprep.subr.mxu0 0.0
        %493 = vmatpush1.xpose.msra.mxu0 0.0
        %494 = vmatprep.subr.mxu0 0.0
        %495 = vmatpush1.xpose.msra.mxu0 0.0
        %496 = vmatprep.subr.mxu0 0.0
        %497 = vmatpush1.xpose.msra.mxu0 0.0
        %498 = vmatprep.subr.mxu0 0.0
        %499 = vmatpush1.xpose.msra.mxu0 0.0
        %500 = vmatprep.subr.mxu0 0.0
        %501 = vmatpush1.xpose.msra.mxu0 0.0
        %502 = vmatprep.subr.mxu0 0.0
        %503 = vmatpush1.xpose.msra.mxu0 0.0
        %504 = vmatprep.subr.mxu0 0.0
        %505 = vmatpush1.xpose.msra.mxu0 0.0
        %506 = vmatprep.subr.mxu0 0.0
        %507 = vmatpush1.xpose.msra.mxu0 0.0
        %508 = vmatprep.subr.mxu0 0.0
        %509 = vmatpush1.xpose.msra.mxu0 0.0
        %510 = vmatprep.subr.mxu0 0.0
        %511 = vmatpush1.xpose.msra.mxu0 0.0
        %512 = vmatprep.subr.mxu0 0.0
        %513 = vmatpush1.xpose.msra.mxu0 0.0
        %514 = vmatprep.subr.mxu0 0.0
        %515 = vmatpush1.xpose.msra.mxu0 0.0
        %516 = vmatprep.subr.mxu0 0.0
        %517 = vmatpush1.xpose.msra.mxu0 0.0
        %518 = vmatprep.subr.mxu0 0.0
        %519 = vmatpush1.xpose.msra.mxu0 0.0
        %520 = vmatprep.subr.mxu0 0.0
        %521 = vmatpush1.xpose.msra.mxu0 0.0
        %522 = vmatprep.subr.mxu0 0.0
        %523 = vmatpush1.xpose.msra.mxu0 0.0
        %524 = vmatprep.subr.mxu0 0.0
        %525 = vmatpush1.xpose.msra.mxu0 0.0
        %526 = vmatprep.subr.mxu0 0.0
        %527 = vmatpush1.xpose.msra.mxu0 0.0
        %528 = vmatprep.subr.mxu0 0.0
        %529 = vmatpush1.xpose.msra.mxu0 0.0
        %530 = vmatprep.subr.mxu0 0.0
        %531 = vmatpush1.xpose.msra.mxu0 0.0
        %532 = vmatprep.mubr.f32.mxu0 0.0
        %533 = vmatmul.mubr.f32.gmra.mrb[0].mxu0 %v464
        %v534 = vpop.f32.mrb[0].mxu0
        %v535 = vadd.f32 0.0, %v534
        %v536 = vpop.f32.mrb[0].mxu0
        %537 = vdwg.mxu0
        %v538 = vsel %vm297, %v535, -inf
        %539 = vmax.xlane.f32.xlu0 %v538
        %v540 = vpop.xlane.xlu0 %539
        %v541 = vsub.f32 %v535, %v540
        %v542 = vmul.f32 %v541, 1.442695
        %v543 = vpow.pop %v542
        %v544 = vsel %vm297, %v543, 0.0
        %545 = vadd.xlane.f32.xlu0 %v544
        %v546 = vpop.xlane.xlu0 %545
        %v547 = vrcp.pop %v546
        %v548 = vmul.f32 %v543, %v547
        %549 = vrot.lane.b32.xlu0 %v291, 56
        %v550 = vpop.permute.xlu0 %549
        %v553 = vsel %vm297, %v548, 0
        %555 = vmatprep.subr.mxu0 0.0
        %556 = vmatpush1.msra.mxu0 %v550
        %557 = vmatprep.subr.mxu0 0.0
        %558 = vmatpush1.msra.mxu0 0.0
        %559 = vmatprep.subr.mxu0 0.0
        %560 = vmatpush1.msra.mxu0 0.0
        %561 = vmatprep.subr.mxu0 0.0
        %562 = vmatpush1.msra.mxu0 0.0
        %563 = vmatprep.subr.mxu0 0.0
        %564 = vmatpush1.msra.mxu0 0.0
        %565 = vmatprep.subr.mxu0 0.0
        %566 = vmatpush1.msra.mxu0 0.0
        %567 = vmatprep.subr.mxu0 0.0
        %568 = vmatpush1.msra.mxu0 0.0
        %569 = vmatprep.subr.mxu0 0.0
        %570 = vmatpush1.msra.mxu0 0.0
        %571 = vmatprep.subr.mxu0 0.0
        %572 = vmatpush1.msra.mxu0 0.0
        %573 = vmatprep.subr.mxu0 0.0
        %574 = vmatpush1.msra.mxu0 0.0
        %575 = vmatprep.subr.mxu0 0.0
        %576 = vmatpush1.msra.mxu0 0.0
        %577 = vmatprep.subr.mxu0 0.0
        %578 = vmatpush1.msra.mxu0 0.0
        %579 = vmatprep.subr.mxu0 0.0
        %580 = vmatpush1.msra.mxu0 0.0
        %581 = vmatprep.subr.mxu0 0.0
        %582 = vmatpush1.msra.mxu0 0.0
        %583 = vmatprep.subr.mxu0 0.0
        %584 = vmatpush1.msra.mxu0 0.0
        %585 = vmatprep.subr.mxu0 0.0
        %586 = vmatpush1.msra.mxu0 0.0
        %587 = vmatprep.subr.mxu0 0.0
        %588 = vmatpush1.msra.mxu0 0.0
        %589 = vmatprep.subr.mxu0 0.0
        %590 = vmatpush1.msra.mxu0 0.0
        %591 = vmatprep.subr.mxu0 0.0
        %592 = vmatpush1.msra.mxu0 0.0
        %593 = vmatprep.subr.mxu0 0.0
        %594 = vmatpush1.msra.mxu0 0.0
        %595 = vmatprep.subr.mxu0 0.0
        %596 = vmatpush1.msra.mxu0 0.0
        %597 = vmatprep.subr.mxu0 0.0
        %598 = vmatpush1.msra.mxu0 0.0
        %599 = vmatprep.subr.mxu0 0.0
        %600 = vmatpush1.msra.mxu0 0.0
        %601 = vmatprep.subr.mxu0 0.0
        %602 = vmatpush1.msra.mxu0 0.0
        %603 = vmatprep.subr.mxu0 0.0
        %604 = vmatpush1.msra.mxu0 0.0
        %605 = vmatprep.subr.mxu0 0.0
        %606 = vmatpush1.msra.mxu0 0.0
        %607 = vmatprep.subr.mxu0 0.0
        %608 = vmatpush1.msra.mxu0 0.0
        %609 = vmatprep.subr.mxu0 0.0
        %610 = vmatpush1.msra.mxu0 0.0
        %611 = vmatprep.subr.mxu0 0.0
        %612 = vmatpush1.msra.mxu0 0.0
        %613 = vmatprep.subr.mxu0 0.0
        %614 = vmatpush1.msra.mxu0 0.0
        %615 = vmatprep.subr.mxu0 0.0
        %616 = vmatpush1.msra.mxu0 0.0
        %617 = vmatprep.subr.mxu0 0.0
        %618 = vmatpush1.msra.mxu0 0.0
        %619 = vmatprep.mubr.f32.mxu0 0.0
        %620 = vmatmul.mubr.f32.gmra.mrb[0].mxu0 %v553
        %v621 = vpop.f32.mrb[0].mxu0
        %v622 = vadd.f32 0.0, %v621
        %v623 = vpop.f32.mrb[0].mxu0
        %624 = vdwg.mxu0
        %626 = vrot.lane.b32.xlu0 %v622, 8
        %v627 = vpop.permute.xlu0 %626
        %vm629 = vcmask 130112
        %630 = vst.msk [vmem:[#allocation2] sm:$0xff] %vm629, %v627
        %631 = vrot.lane.b32.xlu0 %v291, 112
        %v632 = vpop.permute.xlu0 %631
        %633 = vrot.lane.b32.xlu0 %v291, 80
        %v634 = vpop.permute.xlu0 %633
        %v635 = vsel %vm297, %v632, 0
        %v637 = vsel %vm297, %v634, 0
        %639 = vmatprep.subr.mxu0 0.0
        %640 = vmatpush1.xpose.msra.mxu0 %v637
        %641 = vmatprep.subr.mxu0 0.0
        %642 = vmatpush1.xpose.msra.mxu0 0.0
        %643 = vmatprep.subr.mxu0 0.0
        %644 = vmatpush1.xpose.msra.mxu0 0.0
        %645 = vmatprep.subr.mxu0 0.0
        %646 = vmatpush1.xpose.msra.mxu0 0.0
        %647 = vmatprep.subr.mxu0 0.0
        %648 = vmatpush1.xpose.msra.mxu0 0.0
        %649 = vmatprep.subr.mxu0 0.0
        %650 = vmatpush1.xpose.msra.mxu0 0.0
        %651 = vmatprep.subr.mxu0 0.0
        %652 = vmatpush1.xpose.msra.mxu0 0.0
        %653 = vmatprep.subr.mxu0 0.0
        %654 = vmatpush1.xpose.msra.mxu0 0.0
        %655 = vmatprep.subr.mxu0 0.0
        %656 = vmatpush1.xpose.msra.mxu0 0.0
        %657 = vmatprep.subr.mxu0 0.0
        %658 = vmatpush1.xpose.msra.mxu0 0.0
        %659 = vmatprep.subr.mxu0 0.0
        %660 = vmatpush1.xpose.msra.mxu0 0.0
        %661 = vmatprep.subr.mxu0 0.0
        %662 = vmatpush1.xpose.msra.mxu0 0.0
        %663 = vmatprep.subr.mxu0 0.0
        %664 = vmatpush1.xpose.msra.mxu0 0.0
        %665 = vmatprep.subr.mxu0 0.0
        %666 = vmatpush1.xpose.msra.mxu0 0.0
        %667 = vmatprep.subr.mxu0 0.0
        %668 = vmatpush1.xpose.msra.mxu0 0.0
        %669 = vmatprep.subr.mxu0 0.0
        %670 = vmatpush1.xpose.msra.mxu0 0.0
        %671 = vmatprep.subr.mxu0 0.0
        %672 = vmatpush1.xpose.msra.mxu0 0.0
        %673 = vmatprep.subr.mxu0 0.0
        %674 = vmatpush1.xpose.msra.mxu0 0.0
        %675 = vmatprep.subr.mxu0 0.0
        %676 = vmatpush1.xpose.msra.mxu0 0.0
        %677 = vmatprep.subr.mxu0 0.0
        %678 = vmatpush1.xpose.msra.mxu0 0.0
        %679 = vmatprep.subr.mxu0 0.0
        %680 = vmatpush1.xpose.msra.mxu0 0.0
        %681 = vmatprep.subr.mxu0 0.0
        %682 = vmatpush1.xpose.msra.mxu0 0.0
        %683 = vmatprep.subr.mxu0 0.0
        %684 = vmatpush1.xpose.msra.mxu0 0.0
        %685 = vmatprep.subr.mxu0 0.0
        %686 = vmatpush1.xpose.msra.mxu0 0.0
        %687 = vmatprep.subr.mxu0 0.0
        %688 = vmatpush1.xpose.msra.mxu0 0.0
        %689 = vmatprep.subr.mxu0 0.0
        %690 = vmatpush1.xpose.msra.mxu0 0.0
        %691 = vmatprep.subr.mxu0 0.0
        %692 = vmatpush1.xpose.msra.mxu0 0.0
        %693 = vmatprep.subr.mxu0 0.0
        %694 = vmatpush1.xpose.msra.mxu0 0.0
        %695 = vmatprep.subr.mxu0 0.0
        %696 = vmatpush1.xpose.msra.mxu0 0.0
        %697 = vmatprep.subr.mxu0 0.0
        %698 = vmatpush1.xpose.msra.mxu0 0.0
        %699 = vmatprep.subr.mxu0 0.0
        %700 = vmatpush1.xpose.msra.mxu0 0.0
        %701 = vmatprep.subr.mxu0 0.0
        %702 = vmatpush1.xpose.msra.mxu0 0.0
        %703 = vmatprep.mubr.f32.mxu0 0.0
        %704 = vmatmul.mubr.f32.gmra.mrb[0].mxu0 %v635
        %v705 = vpop.f32.mrb[0].mxu0
        %v706 = vadd.f32 0.0, %v705
        %v707 = vpop.f32.mrb[0].mxu0
        %708 = vdwg.mxu0
        %v709 = vsel %vm297, %v706, -inf
        %710 = vmax.xlane.f32.xlu0 %v709
        %v711 = vpop.xlane.xlu0 %710
        %v712 = vsub.f32 %v706, %v711
        %v713 = vmul.f32 %v712, 1.442695
        %v714 = vpow.pop %v713
        %v715 = vsel %vm297, %v714, 0.0
        %716 = vadd.xlane.f32.xlu0 %v715
        %v717 = vpop.xlane.xlu0 %716
        %v718 = vrcp.pop %v717
        %v719 = vmul.f32 %v714, %v718
        %720 = vrot.lane.b32.xlu0 %v291, 48
        %v721 = vpop.permute.xlu0 %720
        %v724 = vsel %vm297, %v719, 0
        %726 = vmatprep.subr.mxu0 0.0
        %727 = vmatpush1.msra.mxu0 %v721
        %728 = vmatprep.subr.mxu0 0.0
        %729 = vmatpush1.msra.mxu0 0.0
        %730 = vmatprep.subr.mxu0 0.0
        %731 = vmatpush1.msra.mxu0 0.0
        %732 = vmatprep.subr.mxu0 0.0
        %733 = vmatpush1.msra.mxu0 0.0
        %734 = vmatprep.subr.mxu0 0.0
        %735 = vmatpush1.msra.mxu0 0.0
        %736 = vmatprep.subr.mxu0 0.0
        %737 = vmatpush1.msra.mxu0 0.0
        %738 = vmatprep.subr.mxu0 0.0
        %739 = vmatpush1.msra.mxu0 0.0
        %740 = vmatprep.subr.mxu0 0.0
        %741 = vmatpush1.msra.mxu0 0.0
        %742 = vmatprep.subr.mxu0 0.0
        %743 = vmatpush1.msra.mxu0 0.0
        %744 = vmatprep.subr.mxu0 0.0
        %745 = vmatpush1.msra.mxu0 0.0
        %746 = vmatprep.subr.mxu0 0.0
        %747 = vmatpush1.msra.mxu0 0.0
        %748 = vmatprep.subr.mxu0 0.0
        %749 = vmatpush1.msra.mxu0 0.0
        %750 = vmatprep.subr.mxu0 0.0
        %751 = vmatpush1.msra.mxu0 0.0
        %752 = vmatprep.subr.mxu0 0.0
        %753 = vmatpush1.msra.mxu0 0.0
        %754 = vmatprep.subr.mxu0 0.0
        %755 = vmatpush1.msra.mxu0 0.0
        %756 = vmatprep.subr.mxu0 0.0
        %757 = vmatpush1.msra.mxu0 0.0
        %758 = vmatprep.subr.mxu0 0.0
        %759 = vmatpush1.msra.mxu0 0.0
        %760 = vmatprep.subr.mxu0 0.0
        %761 = vmatpush1.msra.mxu0 0.0
        %762 = vmatprep.subr.mxu0 0.0
        %763 = vmatpush1.msra.mxu0 0.0
        %764 = vmatprep.subr.mxu0 0.0
        %765 = vmatpush1.msra.mxu0 0.0
        %766 = vmatprep.subr.mxu0 0.0
        %767 = vmatpush1.msra.mxu0 0.0
        %768 = vmatprep.subr.mxu0 0.0
        %769 = vmatpush1.msra.mxu0 0.0
        %770 = vmatprep.subr.mxu0 0.0
        %771 = vmatpush1.msra.mxu0 0.0
        %772 = vmatprep.subr.mxu0 0.0
        %773 = vmatpush1.msra.mxu0 0.0
        %774 = vmatprep.subr.mxu0 0.0
        %775 = vmatpush1.msra.mxu0 0.0
        %776 = vmatprep.subr.mxu0 0.0
        %777 = vmatpush1.msra.mxu0 0.0
        %778 = vmatprep.subr.mxu0 0.0
        %779 = vmatpush1.msra.mxu0 0.0
        %780 = vmatprep.subr.mxu0 0.0
        %781 = vmatpush1.msra.mxu0 0.0
        %782 = vmatprep.subr.mxu0 0.0
        %783 = vmatpush1.msra.mxu0 0.0
        %784 = vmatprep.subr.mxu0 0.0
        %785 = vmatpush1.msra.mxu0 0.0
        %786 = vmatprep.subr.mxu0 0.0
        %787 = vmatpush1.msra.mxu0 0.0
        %788 = vmatprep.subr.mxu0 0.0
        %789 = vmatpush1.msra.mxu0 0.0
        %790 = vmatprep.mubr.f32.mxu0 0.0
        %791 = vmatmul.mubr.f32.gmra.mrb[0].mxu0 %v724
        %v792 = vpop.f32.mrb[0].mxu0
        %v793 = vadd.f32 0.0, %v792
        %v794 = vpop.f32.mrb[0].mxu0
        %795 = vdwg.mxu0
        %797 = vrot.lane.b32.xlu0 %v793, 16
        %v798 = vpop.permute.xlu0 %797
        %vm800 = vcmask 195712
        %801 = vst.msk [vmem:[#allocation2] sm:$0xff] %vm800, %v798
        %802 = vrot.lane.b32.xlu0 %v291, 104
        %v803 = vpop.permute.xlu0 %802
        %804 = vrot.lane.b32.xlu0 %v291, 72
        %v805 = vpop.permute.xlu0 %804
        %v806 = vsel %vm297, %v803, 0
        %v808 = vsel %vm297, %v805, 0
        %810 = vmatprep.subr.mxu0 0.0
        %811 = vmatpush1.xpose.msra.mxu0 %v808
        %812 = vmatprep.subr.mxu0 0.0
        %813 = vmatpush1.xpose.msra.mxu0 0.0
        %814 = vmatprep.subr.mxu0 0.0
        %815 = vmatpush1.xpose.msra.mxu0 0.0
        %816 = vmatprep.subr.mxu0 0.0
        %817 = vmatpush1.xpose.msra.mxu0 0.0
        %818 = vmatprep.subr.mxu0 0.0
        %819 = vmatpush1.xpose.msra.mxu0 0.0
        %820 = vmatprep.subr.mxu0 0.0
        %821 = vmatpush1.xpose.msra.mxu0 0.0
        %822 = vmatprep.subr.mxu0 0.0
        %823 = vmatpush1.xpose.msra.mxu0 0.0
        %824 = vmatprep.subr.mxu0 0.0
        %825 = vmatpush1.xpose.msra.mxu0 0.0
        %826 = vmatprep.subr.mxu0 0.0
        %827 = vmatpush1.xpose.msra.mxu0 0.0
        %828 = vmatprep.subr.mxu0 0.0
        %829 = vmatpush1.xpose.msra.mxu0 0.0
        %830 = vmatprep.subr.mxu0 0.0
        %831 = vmatpush1.xpose.msra.mxu0 0.0
        %832 = vmatprep.subr.mxu0 0.0
        %833 = vmatpush1.xpose.msra.mxu0 0.0
        %834 = vmatprep.subr.mxu0 0.0
        %835 = vmatpush1.xpose.msra.mxu0 0.0
        %836 = vmatprep.subr.mxu0 0.0
        %837 = vmatpush1.xpose.msra.mxu0 0.0
        %838 = vmatprep.subr.mxu0 0.0
        %839 = vmatpush1.xpose.msra.mxu0 0.0
        %840 = vmatprep.subr.mxu0 0.0
        %841 = vmatpush1.xpose.msra.mxu0 0.0
        %842 = vmatprep.subr.mxu0 0.0
        %843 = vmatpush1.xpose.msra.mxu0 0.0
        %844 = vmatprep.subr.mxu0 0.0
        %845 = vmatpush1.xpose.msra.mxu0 0.0
        %846 = vmatprep.subr.mxu0 0.0
        %847 = vmatpush1.xpose.msra.mxu0 0.0
        %848 = vmatprep.subr.mxu0 0.0
        %849 = vmatpush1.xpose.msra.mxu0 0.0
        %850 = vmatprep.subr.mxu0 0.0
        %851 = vmatpush1.xpose.msra.mxu0 0.0
        %852 = vmatprep.subr.mxu0 0.0
        %853 = vmatpush1.xpose.msra.mxu0 0.0
        %854 = vmatprep.subr.mxu0 0.0
        %855 = vmatpush1.xpose.msra.mxu0 0.0
        %856 = vmatprep.subr.mxu0 0.0
        %857 = vmatpush1.xpose.msra.mxu0 0.0
        %858 = vmatprep.subr.mxu0 0.0
        %859 = vmatpush1.xpose.msra.mxu0 0.0
        %860 = vmatprep.subr.mxu0 0.0
        %861 = vmatpush1.xpose.msra.mxu0 0.0
        %862 = vmatprep.subr.mxu0 0.0
        %863 = vmatpush1.xpose.msra.mxu0 0.0
        %864 = vmatprep.subr.mxu0 0.0
        %865 = vmatpush1.xpose.msra.mxu0 0.0
        %866 = vmatprep.subr.mxu0 0.0
        %867 = vmatpush1.xpose.msra.mxu0 0.0
        %868 = vmatprep.subr.mxu0 0.0
        %869 = vmatpush1.xpose.msra.mxu0 0.0
        %870 = vmatprep.subr.mxu0 0.0
        %871 = vmatpush1.xpose.msra.mxu0 0.0
        %872 = vmatprep.subr.mxu0 0.0
        %873 = vmatpush1.xpose.msra.mxu0 0.0
        %874 = vmatprep.mubr.f32.mxu0 0.0
        %875 = vmatmul.mubr.f32.gmra.mrb[0].mxu0 %v806
        %v876 = vpop.f32.mrb[0].mxu0
        %v877 = vadd.f32 0.0, %v876
        %v878 = vpop.f32.mrb[0].mxu0
        %879 = vdwg.mxu0
        %v880 = vsel %vm297, %v877, -inf
        %881 = vmax.xlane.f32.xlu0 %v880
        %v882 = vpop.xlane.xlu0 %881
        %v883 = vsub.f32 %v877, %v882
        %v884 = vmul.f32 %v883, 1.442695
        %v885 = vpow.pop %v884
        %v886 = vsel %vm297, %v885, 0.0
        %887 = vadd.xlane.f32.xlu0 %v886
        %v888 = vpop.xlane.xlu0 %887
        %v889 = vrcp.pop %v888
        %v890 = vmul.f32 %v885, %v889
        %891 = vrot.lane.b32.xlu0 %v291, 40
        %v892 = vpop.permute.xlu0 %891
        %v895 = vsel %vm297, %v890, 0
        %897 = vmatprep.subr.mxu0 0.0
        %898 = vmatpush1.msra.mxu0 %v892
        %899 = vmatprep.subr.mxu0 0.0
        %900 = vmatpush1.msra.mxu0 0.0
        %901 = vmatprep.subr.mxu0 0.0
        %902 = vmatpush1.msra.mxu0 0.0
        %903 = vmatprep.subr.mxu0 0.0
        %904 = vmatpush1.msra.mxu0 0.0
        %905 = vmatprep.subr.mxu0 0.0
        %906 = vmatpush1.msra.mxu0 0.0
        %907 = vmatprep.subr.mxu0 0.0
        %908 = vmatpush1.msra.mxu0 0.0
        %909 = vmatprep.subr.mxu0 0.0
        %910 = vmatpush1.msra.mxu0 0.0
        %911 = vmatprep.subr.mxu0 0.0
        %912 = vmatpush1.msra.mxu0 0.0
        %913 = vmatprep.subr.mxu0 0.0
        %914 = vmatpush1.msra.mxu0 0.0
        %915 = vmatprep.subr.mxu0 0.0
        %916 = vmatpush1.msra.mxu0 0.0
        %917 = vmatprep.subr.mxu0 0.0
        %918 = vmatpush1.msra.mxu0 0.0
        %919 = vmatprep.subr.mxu0 0.0
        %920 = vmatpush1.msra.mxu0 0.0
        %921 = vmatprep.subr.mxu0 0.0
        %922 = vmatpush1.msra.mxu0 0.0
        %923 = vmatprep.subr.mxu0 0.0
        %924 = vmatpush1.msra.mxu0 0.0
        %925 = vmatprep.subr.mxu0 0.0
        %926 = vmatpush1.msra.mxu0 0.0
        %927 = vmatprep.subr.mxu0 0.0
        %928 = vmatpush1.msra.mxu0 0.0
        %929 = vmatprep.subr.mxu0 0.0
        %930 = vmatpush1.msra.mxu0 0.0
        %931 = vmatprep.subr.mxu0 0.0
        %932 = vmatpush1.msra.mxu0 0.0
        %933 = vmatprep.subr.mxu0 0.0
        %934 = vmatpush1.msra.mxu0 0.0
        %935 = vmatprep.subr.mxu0 0.0
        %936 = vmatpush1.msra.mxu0 0.0
        %937 = vmatprep.subr.mxu0 0.0
        %938 = vmatpush1.msra.mxu0 0.0
        %939 = vmatprep.subr.mxu0 0.0
        %940 = vmatpush1.msra.mxu0 0.0
        %941 = vmatprep.subr.mxu0 0.0
        %942 = vmatpush1.msra.mxu0 0.0
        %943 = vmatprep.subr.mxu0 0.0
        %944 = vmatpush1.msra.mxu0 0.0
        %945 = vmatprep.subr.mxu0 0.0
        %946 = vmatpush1.msra.mxu0 0.0
        %947 = vmatprep.subr.mxu0 0.0
        %948 = vmatpush1.msra.mxu0 0.0
        %949 = vmatprep.subr.mxu0 0.0
        %950 = vmatpush1.msra.mxu0 0.0
        %951 = vmatprep.subr.mxu0 0.0
        %952 = vmatpush1.msra.mxu0 0.0
        %953 = vmatprep.subr.mxu0 0.0
        %954 = vmatpush1.msra.mxu0 0.0
        %955 = vmatprep.subr.mxu0 0.0
        %956 = vmatpush1.msra.mxu0 0.0
        %957 = vmatprep.subr.mxu0 0.0
        %958 = vmatpush1.msra.mxu0 0.0
        %959 = vmatprep.subr.mxu0 0.0
        %960 = vmatpush1.msra.mxu0 0.0
        %961 = vmatprep.mubr.f32.mxu0 0.0
        %962 = vmatmul.mubr.f32.gmra.mrb[0].mxu0 %v895
        %v963 = vpop.f32.mrb[0].mxu0
        %v964 = vadd.f32 0.0, %v963
        %v965 = vpop.f32.mrb[0].mxu0
        %966 = vdwg.mxu0
        %968 = vrot.lane.b32.xlu0 %v964, 24
        %v969 = vpop.permute.xlu0 %968
        %vm971 = vcmask 261312
        %972 = vst.msk [vmem:[#allocation2] sm:$0xff] %vm971, %v969
        %v973 = vld [vmem:[#allocation2] sm:$0xff]
        %v974 = vld [vmem:[#allocation8] sm:$0xff]
        %v975 = vld [vmem:[#allocation8 + $0x8] sm:$0xff]
        %v976 = vld [vmem:[#allocation8 + $0x10] sm:$0xff]
        %v977 = vld [vmem:[#allocation8 + $0x18] sm:$0xff]
        %v979 = vsel %vm220, %v973, 0
        %981 = vmatprep.subr.mxu0 0.0
        %982 = vmatpush1.msra.mxu0 %v974
        %983 = vmatprep.subr.mxu0 0.0
        %984 = vmatpush1.msra.mxu0 %v975
        %985 = vmatprep.subr.mxu0 0.0
        %986 = vmatpush1.msra.mxu0 %v976
        %987 = vmatprep.subr.mxu0 0.0
        %988 = vmatpush1.msra.mxu0 %v977
        %989 = vmatprep.subr.mxu0 0.0
        %990 = vmatpush1.msra.mxu0 0.0
        %991 = vmatprep.subr.mxu0 0.0
        %992 = vmatpush1.msra.mxu0 0.0
        %993 = vmatprep.subr.mxu0 0.0
        %994 = vmatpush1.msra.mxu0 0.0
        %995 = vmatprep.subr.mxu0 0.0
        %996 = vmatpush1.msra.mxu0 0.0
        %997 = vmatprep.subr.mxu0 0.0
        %998 = vmatpush1.msra.mxu0 0.0
        %999 = vmatprep.subr.mxu0 0.0
        %1000 = vmatpush1.msra.mxu0 0.0
        %1001 = vmatprep.subr.mxu0 0.0
        %1002 = vmatpush1.msra.mxu0 0.0
        %1003 = vmatprep.subr.mxu0 0.0
        %1004 = vmatpush1.msra.mxu0 0.0
        %1005 = vmatprep.subr.mxu0 0.0
        %1006 = vmatpush1.msra.mxu0 0.0
        %1007 = vmatprep.subr.mxu0 0.0
        %1008 = vmatpush1.msra.mxu0 0.0
        %1009 = vmatprep.subr.mxu0 0.0
        %1010 = vmatpush1.msra.mxu0 0.0
        %1011 = vmatprep.subr.mxu0 0.0
        %1012 = vmatpush1.msra.mxu0 0.0
        %1013 = vmatprep.subr.mxu0 0.0
        %1014 = vmatpush1.msra.mxu0 0.0
        %1015 = vmatprep.subr.mxu0 0.0
        %1016 = vmatpush1.msra.mxu0 0.0
        %1017 = vmatprep.subr.mxu0 0.0
        %1018 = vmatpush1.msra.mxu0 0.0
        %1019 = vmatprep.subr.mxu0 0.0
        %1020 = vmatpush1.msra.mxu0 0.0
        %1021 = vmatprep.subr.mxu0 0.0
        %1022 = vmatpush1.msra.mxu0 0.0
        %1023 = vmatprep.subr.mxu0 0.0
        %1024 = vmatpush1.msra.mxu0 0.0
        %1025 = vmatprep.subr.mxu0 0.0
        %1026 = vmatpush1.msra.mxu0 0.0
        %1027 = vmatprep.subr.mxu0 0.0
        %1028 = vmatpush1.msra.mxu0 0.0
        %1029 = vmatprep.subr.mxu0 0.0
        %1030 = vmatpush1.msra.mxu0 0.0
        %1031 = vmatprep.subr.mxu0 0.0
        %1032 = vmatpush1.msra.mxu0 0.0
        %1033 = vmatprep.subr.mxu0 0.0
        %1034 = vmatpush1.msra.mxu0 0.0
        %1035 = vmatprep.subr.mxu0 0.0
        %1036 = vmatpush1.msra.mxu0 0.0
        %1037 = vmatprep.subr.mxu0 0.0
        %1038 = vmatpush1.msra.mxu0 0.0
        %1039 = vmatprep.subr.mxu0 0.0
        %1040 = vmatpush1.msra.mxu0 0.0
        %1041 = vmatprep.subr.mxu0 0.0
        %1042 = vmatpush1.msra.mxu0 0.0
        %1043 = vmatprep.subr.mxu0 0.0
        %1044 = vmatpush1.msra.mxu0 0.0
        %1045 = vmatprep.mubr.f32.mxu0 0.0
        %1046 = vmatmul.mubr.f32.gmra.mrb[0].mxu0 %v979
        %v1047 = vpop.f32.mrb[0].mxu0
        %v1048 = vadd.f32 0.0, %v1047
        %v1049 = vpop.f32.mrb[0].mxu0
        %1050 = vdwg.mxu0
        %1051 = vst.msk [vmem:[%s214] sm:$0xff] %vm220, %v1048
        %s1052 = sand.u32 %s97, 1
        %s1053 = scalar_lea.sflag [#allocation5], %s1052
        %s1054 = sand.u32 %s97, 1
        %s1055 = smul.addr %s1054, 8
        %s1056 = scalar_lea.vmem [#allocation9], %s1055
        // Predicated region
        $region45: #{multi_head_attention.1} parent=31 // pred_check
          %p1057 = pneg %p107
        $region46: #{multi_head_attention.1} parent=31 // pred_check_branch
          %1059 = sbr.rel (%p1057) target = $region48
        $region47: #{multi_head_attention.1} parent=31 // pred_region
          %s1061 = ssub.s32 128, 128
          %1062 = vsyncadd %s1053, %s1061
          %s1063 = smul.addr %s21, 128
          %s1064 = scalar_lea.hbm %s3, %s1063
          %s1066 = sshll.u32 %s1056, 4
          %s1067 = int_to_ptr.vmem [resolvable:$true] %s1066
          %1069 = dma.vmem_to_hbm [thread:$0]  %s1067, 128, %s1064, %s1053
        $region48: #{multi_head_attention.1} parent=31 // pred_fallthru
          _
      $region32: #{multi_head_attention.1} parent=5 // pred_fallthru
        _
      %p1070 = scmp.le.s32.totalorder 2, %s16
      // Predicated region
      $region49: #{multi_head_attention.1} parent=5 // pred_check
        %p1071 = pneg %p1070
      $region50: #{multi_head_attention.1} parent=5 // pred_check_branch
        %1073 = sbr.rel (%p1071) target = $region52
      $region51: #{multi_head_attention.1} parent=5 // pred_region
        %s1074 = ssub.s32 %s16, 2
        // Predicated region
        $region53: #{multi_head_attention.1} parent=51 // pred_check
          %p1075 = pneg %p113
        $region54: #{multi_head_attention.1} parent=51 // pred_check_branch
          %1077 = sbr.rel (%p1075) target = $region56
        $region55: #{multi_head_attention.1} parent=51 // pred_region
          %s1078 = sand.u32 %s98, 1
          %s1079 = scalar_lea.sflag [#allocation5], %s1078
          %s1080 = sand.u32 %s98, 1
          %s1081 = smul.addr %s1080, 8
          %s1082 = scalar_lea.vmem [#allocation9], %s1081
          %1083 = dma.done %s1079, 128
        $region56: #{multi_head_attention.1} parent=51 // pred_fallthru
          _
      $region52: #{multi_head_attention.1} parent=5 // pred_fallthru
        _
    $region6: #{multi_head_attention.1} parent=1 // loop_footer
      %s20 = sadd.s32 1, %s16
    $region7: #{multi_head_attention.1} parent=1 // loop_footer_branch
      %15 = sbr.rel target = $region3
    $region8: #{multi_head_attention.1} parent=1 // loop_exit
      _
    %1084 = vsyncpa [#allocation4], 1
    %s1085 = scalar_lea.sflag [#allocation4], 1
    %1086 = vsyncpa %s1085, 1
    %1087 = vsyncpa [#allocation7], 1
    %1088 = vsyncpa [#allocation5], 1
    %s1089 = scalar_lea.sflag [#allocation5], 1
    %1090 = vsyncpa %s1089, 1

</llo_original>
